<compile_context>
chip_gen: v7x
topology: tpu7x:2x2x1
jax: 0.10.0
libtpu: 0.0.40
codegen_flags: <defaults>
</compile_context>

<pallas_src>
import math

import jax
import jax.numpy as jnp
from jax.experimental import pallas as pl
from jax.experimental.pallas import tpu as pltpu

_NUM_SINGERS = 417
_NUM_GENRES = 18


def _round_up(x, m):
    return ((x + m - 1) // m) * m


# ----------------------------------------------------------------------------
# Kernel 1: whole-batch BatchNorm1d statistics -> per-feature (scale, shift)
# ----------------------------------------------------------------------------
def bn_scale_shift_kernel(x_ref, bn_ref, ac_ref):
    x = x_ref[...]                                            # (B, F) f32
    inv_b = jnp.float32(1.0 / x_ref.shape[0])
    mean = jnp.sum(x, axis=0, keepdims=True) * inv_b          # (1, F)
    d = x - mean
    var = jnp.sum(d * d, axis=0, keepdims=True) * inv_b       # two-pass, biased
    scale = bn_ref[0:1, :] * jax.lax.rsqrt(var + 1e-5)        # gamma * invstd
    shift = bn_ref[1:2, :] - mean * scale                     # beta - mean*scale
    ac_ref[0:1, :] = scale
    ac_ref[1:2, :] = shift


# ----------------------------------------------------------------------------
# Kernel 2: batch-tiled fused BN-apply + Linear + embedding gathers + concat
# ----------------------------------------------------------------------------
def item_fused_kernel(x_ref, idx_ref, ac_ref, w_ref, o_ref):
    tb, f = x_ref.shape
    k_tail = w_ref.shape[0] - f

    # BatchNorm apply (stats precomputed over the whole batch by kernel 1).
    xn = x_ref[...] * ac_ref[0:1, :] + ac_ref[1:2, :]         # (TB, F)

    # One-hot over [bias | singer vocab | genre vocab] in a single row space;
    # offsets are baked in so no lane shifts are needed.
    singer = idx_ref[:, 0:1]                                   # (TB, 1) int32
    genre = idx_ref[:, 1:2]                                    # (TB, 1) int32
    col = jax.lax.broadcasted_iota(jnp.int32, (tb, k_tail), 1)
    onehot = ((col == 0)
              | (col == singer + 1)
              | (col == genre + (1 + _NUM_SINGERS))).astype(jnp.float32)

    hi = jax.lax.Precision.HIGHEST
    out = jnp.dot(xn, w_ref[0:f, :],
                  preferred_element_type=jnp.float32, precision=hi)
    out = out + jnp.dot(onehot, w_ref[f:, :],
                        preferred_element_type=jnp.float32, precision=hi)
    o_ref[...] = out                                           # single (TB, 3E) store


# ----------------------------------------------------------------------------
# Parameter construction (deterministic, matches module __init__ shapes)
# ----------------------------------------------------------------------------
def _xavier_uniform(key, shape):
    fan_out, fan_in = shape
    bound = math.sqrt(6.0 / (fan_in + fan_out))
    return jax.random.uniform(key, shape, jnp.float32, -bound, bound)


def make_params(key, song_feature_len, emb_size):
    F, E = song_feature_len, emb_size
    ks = jax.random.split(key, 4)
    lin_bound = 1.0 / math.sqrt(F)

    # nn.Linear(F, E): weight stored PRE-TRANSPOSED as (F, E), bias (E,)
    feature_w_t = jax.random.uniform(ks[0], (E, F), jnp.float32,
                                     -lin_bound, lin_bound).T
    feature_b = jax.random.uniform(ks[1], (E,), jnp.float32,
                                   -lin_bound, lin_bound)
    singers = _xavier_uniform(ks[2], (_NUM_SINGERS, E))
    genre = _xavier_uniform(ks[3], (_NUM_GENRES, E))
    bn_gamma = jnp.ones((F,), jnp.float32)
    bn_beta = jnp.zeros((F,), jnp.float32)

    # Packed weight for the fused kernel (see header comment for layout).
    k_tail = 1 + _NUM_SINGERS + _NUM_GENRES
    k_tail_pad = _round_up(k_tail, 8)            # keep MXU slice 8-row aligned
    w_all = jnp.zeros((F + k_tail_pad, 3 * E), jnp.float32)
    w_all = w_all.at[0:F, 0:E].set(feature_w_t)
    w_all = w_all.at[F, 0:E].set(feature_b)
    w_all = w_all.at[F + 1:F + 1 + _NUM_SINGERS, E:2 * E].set(singers)
    w_all = w_all.at[F + 1 + _NUM_SINGERS:
                     F + 1 + _NUM_SINGERS + _NUM_GENRES, 2 * E:3 * E].set(genre)

    bn_packed = jnp.stack([bn_gamma, bn_beta], axis=0)   # (2, F)

    # TODO(synk): nn.Linear(768, E) for `lyric` and nn.Embedding(42800, E)
    # (MusicEmb) are constructed / looked up in the PyTorch module but never
    # reach the returned tensor -> dead code, intentionally not materialized.
    return {
        "feature_w_t": feature_w_t, "feature_b": feature_b,
        "singers": singers, "genre": genre,
        "bn_gamma": bn_gamma, "bn_beta": bn_beta,
        "w_all": w_all, "bn_packed": bn_packed,
    }


# ----------------------------------------------------------------------------
# Forward pass: stats kernel + batch-tiled fused kernel
# ----------------------------------------------------------------------------
def item_forward(params, music, *, block_b=128):
    x = music["features"].astype(jnp.float32)
    B, F = x.shape
    w_all = params["w_all"]
    K, threeE = w_all.shape
    E = threeE // 3

    singer = jnp.clip(music["singer"].astype(jnp.int32).reshape(B),
                      0, _NUM_SINGERS - 1)
    genre = jnp.clip(music["genre"].astype(jnp.int32).reshape(B),
                     0, _NUM_GENRES - 1)
    idx = jnp.stack([singer, genre], axis=1)                   # (B, 2) int32

    vmem = pl.BlockSpec(memory_space=pltpu.MemorySpace.VMEM)

    # ---- Kernel 1: whole-batch BN stats -> (2, F) [scale; shift] -----------
    ac = pl.pallas_call(
        bn_scale_shift_kernel,
        out_shape=jax.ShapeDtypeStruct((2, F), jnp.float32),
        in_specs=[vmem, vmem],
        out_specs=vmem,
    )(x, params["bn_packed"])

    # ---- Kernel 2: batch-tiled fused forward --------------------------------
    TB = min(block_b, _round_up(B, 8))
    B_pad = _round_up(B, TB)
    if B_pad != B:
        x = jnp.pad(x, ((0, B_pad - B), (0, 0)))
        idx = jnp.pad(idx, ((0, B_pad - B), (0, 0)))

    grid = (B_pad // TB,)
    flops = 2 * B_pad * K * threeE
    bytes_accessed = 4 * (x.size + idx.size + ac.size + w_all.size
                          + B_pad * threeE)

    slab = pl.pallas_call(
        item_fused_kernel,
        out_shape=jax.ShapeDtypeStruct((B_pad, threeE), jnp.float32),
        grid_spec=pltpu.PrefetchScalarGridSpec(
            num_scalar_prefetch=0,
            grid=grid,
            in_specs=[
                pl.BlockSpec((TB, F), lambda i: (i, 0)),        # features (tiled)
                pl.BlockSpec((TB, 2), lambda i: (i, 0)),        # indices (tiled)
                pl.BlockSpec((2, F), lambda i: (0, 0)),         # BN scale/shift (resident)
                pl.BlockSpec((K, threeE), lambda i: (0, 0)),    # packed weights (resident)
            ],
            out_specs=pl.BlockSpec((TB, threeE), lambda i: (i, 0)),
        ),
        compiler_params=pltpu.CompilerParams(
            dimension_semantics=("parallel",)),
        cost_estimate=pl.CostEstimate(flops=flops, transcendentals=0,
                                      bytes_accessed=bytes_accessed),
    )(x, idx, ac, w_all)

    # (B, 3*E) -> (B, 3, E): row i = [feature_i, singer_i, genre_i]
    return slab[:B].reshape(B, 3, E)


# ----------------------------------------------------------------------------
# Pure-JAX reference (correctness check)
# ----------------------------------------------------------------------------
def item_forward_ref(params, music):
    x = music["features"].astype(jnp.float32)
    mean = jnp.mean(x, axis=0, keepdims=True)
    var = jnp.mean((x - mean) ** 2, axis=0, keepdims=True)
    xn = (x - mean) / jnp.sqrt(var + 1e-5) * params["bn_gamma"] + params["bn_beta"]
    feat = jnp.dot(xn, params["feature_w_t"],
                   precision=jax.lax.Precision.HIGHEST) + params["feature_b"]
    sing = params["singers"][music["singer"].astype(jnp.int32)]
    gen = params["genre"][music["genre"].astype(jnp.int32)]
    return jnp.stack([feat, sing, gen], axis=1)


if __name__ == "__main__":
    B = 16
    SONG_FEATURE_LEN = 16
    EMB_SIZE = 32

    key = jax.random.PRNGKey(0)
    kp, kf, kl, ks, kg, ki = jax.random.split(key, 6)
    params = make_params(kp, SONG_FEATURE_LEN, EMB_SIZE)

    music = {
        "features": jax.random.normal(kf, (B, SONG_FEATURE_LEN), jnp.float32),
        "lyric": jax.random.normal(kl, (B, 768), jnp.float32),   # dead in forward
        "singer": jax.random.randint(ks, (B,), 0, _NUM_SINGERS, jnp.int32),
        "genre": jax.random.randint(kg, (B,), 0, _NUM_GENRES, jnp.int32),
        "id": jax.random.randint(ki, (B,), 0, 42800, jnp.int32),  # dead in forward
    }

    # block_b=8 -> grid of 2 steps at B=16, exercising the batch pipeline.
    out = item_forward(params, music, block_b=8)
    jax.block_until_ready(out)
    assert out.shape == (B, 3, EMB_SIZE), out.shape

    ref = item_forward_ref(params, music)
    max_err = float(jnp.max(jnp.abs(out - ref)))
    assert max_err < 2e-4, f"max abs error vs reference: {max_err}"

    print("KERNEL_OK")
</pallas_src>

<mosaic_0001>
module attributes {stable_mosaic.version = 11 : i64} {
  func.func @bn_scale_shift_kernel(%arg0: memref<16x16xf32, #tpu.memory_space<vmem>>, %arg1: memref<2x16xf32, #tpu.memory_space<vmem>>, %arg2: memref<2x16xf32, #tpu.memory_space<vmem>>) attributes {dimension_semantics = [], scalar_prefetch = 0 : i64, scratch_operands = 0 : i64, tpu.core_type = #tpu.core_type<tc>} {
    %c0 = arith.constant 0 : index
    %c0_0 = arith.constant 0 : index
    %0 = vector.load %arg0[%c0, %c0_0] : memref<16x16xf32, #tpu.memory_space<vmem>>, vector<16x16xf32>
    %cst = arith.constant dense<0.000000e+00> : vector<16xf32>
    %1 = vector.multi_reduction <add>, %0, %cst [0] : vector<16x16xf32> to vector<16xf32>
    %2 = vector.shape_cast %1 : vector<16xf32> to vector<1x16xf32>
    %cst_1 = arith.constant 6.250000e-02 : f32
    %3 = vector.broadcast %cst_1 : f32 to vector<1x16xf32>
    %4 = arith.mulf %2, %3 : vector<1x16xf32>
    %5 = vector.broadcast %4 : vector<1x16xf32> to vector<16x16xf32>
    %6 = arith.subf %0, %5 : vector<16x16xf32>
    %7 = arith.mulf %6, %6 : vector<16x16xf32>
    %cst_2 = arith.constant dense<0.000000e+00> : vector<16xf32>
    %8 = vector.multi_reduction <add>, %7, %cst_2 [0] : vector<16x16xf32> to vector<16xf32>
    %9 = vector.shape_cast %8 : vector<16xf32> to vector<1x16xf32>
    %cst_3 = arith.constant 6.250000e-02 : f32
    %10 = vector.broadcast %cst_3 : f32 to vector<1x16xf32>
    %11 = arith.mulf %9, %10 : vector<1x16xf32>
    %c0_4 = arith.constant 0 : index
    %c0_5 = arith.constant 0 : index
    %12 = vector.load %arg1[%c0_4, %c0_5] : memref<2x16xf32, #tpu.memory_space<vmem>>, vector<1x16xf32>
    %cst_6 = arith.constant 9.99999974E-6 : f32
    %13 = vector.broadcast %cst_6 : f32 to vector<1x16xf32>
    %14 = arith.addf %11, %13 : vector<1x16xf32>
    %15 = math.rsqrt %14 : vector<1x16xf32>
    %16 = arith.mulf %12, %15 : vector<1x16xf32>
    %c1 = arith.constant 1 : index
    %c0_7 = arith.constant 0 : index
    %17 = vector.load %arg1[%c1, %c0_7] : memref<2x16xf32, #tpu.memory_space<vmem>>, vector<1x16xf32>
    %18 = arith.mulf %4, %16 : vector<1x16xf32>
    %19 = arith.subf %17, %18 : vector<1x16xf32>
    %c0_8 = arith.constant 0 : index
    %c0_9 = arith.constant 0 : index
    %20 = vector.load %arg2[%c0_8, %c0_9] : memref<2x16xf32, #tpu.memory_space<vmem>>, vector<1x16xf32>
    tpu.vector_store %arg2[%c0_8, %c0_9], %16 {strides = array<i32>} : memref<2x16xf32, #tpu.memory_space<vmem>>, vector<1x16xf32>,
    %c1_10 = arith.constant 1 : index
    %c0_11 = arith.constant 0 : index
    %21 = vector.load %arg2[%c1_10, %c0_11] : memref<2x16xf32, #tpu.memory_space<vmem>>, vector<1x16xf32>
    tpu.vector_store %arg2[%c1_10, %c0_11], %19 {strides = array<i32>} : memref<2x16xf32, #tpu.memory_space<vmem>>, vector<1x16xf32>,
    return
  }
}

</mosaic_0001>

<llo_original>
// kernel: tpu_custom_call.1
$region0: #{tpu_custom_call.1}
  #allocation0 [shape = 'u32[]', space=smem, size = 0x4, offset = 0x4, fixed_abs, tag = 'smem constant byte address 0x4 - core index']
  #allocation1 [shape = 'u32[144,128]{1,0:T(1,128)}', space=vmem, size = 0x12000, scoped, tag = 'internal scratch']
  %s0 = inlined_call_operand.hbm [shape: f32[16,16], index: 0, kind: input, shape index: {}]
  %s1 = inlined_call_operand.vmem [shape: f32[2,16], index: 1, kind: input, shape index: {}]
  %s2 = inlined_call_operand.hbm [shape: f32[2,16], index: 2, kind: output, shape index: {}]
  %s3 = sld [smem:[#allocation0]]
  $region22: #{tpu_custom_call.1} parent=0
    _
  %s5 = ssub.s32 1, %s3
  %s6 = scalar_select 0, %s5, %s3
  $region1: #{tpu_custom_call.1} parent=0
    #allocation2 [shape = 'u8[8192]{0}', space=vmem, size = 0x2000, scoped, tag = 'input window, operand 0, single buffered']
    #allocation3 [shape = 's32[1]{0}', space=sflag, size = 0x4, scoped, tag = 'scoped memory for tpu_custom_call.1']
    #allocation4 [shape = 's32[1]{0}', space=sflag, size = 0x4, scoped, tag = 'scoped memory for tpu_custom_call.1']
    #allocation5 [shape = 'u8[1024]{0}', space=vmem, size = 0x400, scoped, tag = 'output window, operand 0, single buffered']
    %7 = vsyncpa [#allocation3], 0
    %8 = vsyncpa [#allocation4], 0
    // Predicated region
    $region2: #{tpu_custom_call.1} parent=1 // pred_check
      _
    $region3: #{tpu_custom_call.1} parent=1 // pred_check_branch
      %10 = sbr.rel (0) target = $region5
    $region4: #{tpu_custom_call.1} parent=1 // pred_region
      %s12 = ssub.s32 256, 256
      %13 = vsyncadd [#allocation3], %s12
      %s14 = sshll.u32 [#allocation2], 4
      %s15 = int_to_ptr.vmem [resolvable:$true] %s14
      %20 = dma.hbm_to_vmem [thread:$0]  %s0, 256, %s15, [#allocation3], 128, 128, 8
    $region5: #{tpu_custom_call.1} parent=1 // pred_fallthru
      _
    // Predicated region
    $region6: #{tpu_custom_call.1} parent=1 // pred_check
      _
    $region7: #{tpu_custom_call.1} parent=1 // pred_check_branch
      %22 = sbr.rel (0) target = $region9
    $region8: #{tpu_custom_call.1} parent=1 // pred_region
      _
    $region9: #{tpu_custom_call.1} parent=1 // pred_fallthru
      _
    // Predicated region
    $region10: #{tpu_custom_call.1} parent=1 // pred_check
      _
    $region11: #{tpu_custom_call.1} parent=1 // pred_check_branch
      %24 = sbr.rel (0) target = $region13
    $region12: #{tpu_custom_call.1} parent=1 // pred_region
      %25 = dma.done [#allocation3], 256
    $region13: #{tpu_custom_call.1} parent=1 // pred_fallthru
      _
    %v26 = vld [vmem:[#allocation2] sm:$0xff]
    %v27 = vld [vmem:[#allocation2 + $0x8] sm:$0xff]
    %vm28 = vcmask 130048
    %v29 = vsel %vm28, %v26, 0.0
    %v30 = vsel %vm28, %v27, 0.0
    %v31 = vadd.f32 %v29, %v30
    %v32 = vrot.slane %v31, 4
    %v33 = vadd.f32 %v31, %v32
    %v34 = vrot.slane %v33, 2
    %v35 = vadd.f32 %v33, %v34
    %v36 = vrot.slane %v35, 1
    %v37 = vadd.f32 %v35, %v36
    %v38 = vmul.f32 %v37, 0.0625
    %v39 = vsub.f32 %v26, %v38
    %v40 = vsub.f32 %v27, %v38
    %v41 = vmul.f32 %v39, %v39
    %v42 = vmul.f32 %v40, %v40
    %v43 = vsel %vm28, %v41, 0.0
    %v44 = vsel %vm28, %v42, 0.0
    %v45 = vadd.f32 %v43, %v44
    %v46 = vrot.slane %v45, 4
    %v47 = vadd.f32 %v45, %v46
    %v48 = vrot.slane %v47, 2
    %v49 = vadd.f32 %v47, %v48
    %v50 = vrot.slane %v49, 1
    %v51 = vadd.f32 %v49, %v50
    %v52 = vmul.f32 %v51, 0.0625
    %v53 = vld [vmem:[%s1] sm:$0x1]
    %v54 = vadd.f32 %v52, 1e-05
    %v55 = vrsqrt.pop %v54
    %v56 = vmul.f32 %v53, %v55
    %v57 = vld [vmem:[%s1 + $0x1] sm:$0x1]
    %v58 = vmul.f32 %v38, %v56
    %v59 = vsub.f32 %v57, %v58
    %vm60 = vcmask 122880
    %61 = vst.msk [vmem:[#allocation5] sm:$0x1] %vm60, %v56
    %62 = vst.msk [vmem:[#allocation5 + $0x1] sm:$0x1] %vm60, %v59
    // Predicated region
    $region14: #{tpu_custom_call.1} parent=1 // pred_check
      _
    $region15: #{tpu_custom_call.1} parent=1 // pred_check_branch
      %64 = sbr.rel (0) target = $region17
    $region16: #{tpu_custom_call.1} parent=1 // pred_region
      %s66 = ssub.s32 32, 32
      %67 = vsyncadd [#allocation4], %s66
      %s69 = sshll.u32 [#allocation5], 4
      %s70 = int_to_ptr.vmem [resolvable:$true] %s69
      %72 = dma.vmem_to_hbm [thread:$0]  %s70, 32, %s2, [#allocation4]
    $region17: #{tpu_custom_call.1} parent=1 // pred_fallthru
      _
    // Predicated region
    $region18: #{tpu_custom_call.1} parent=1 // pred_check
      _
    $region19: #{tpu_custom_call.1} parent=1 // pred_check_branch
      %74 = sbr.rel (0) target = $region21
    $region20: #{tpu_custom_call.1} parent=1 // pred_region
      %75 = dma.done [#allocation4], 32
    $region21: #{tpu_custom_call.1} parent=1 // pred_fallthru
      _
    %76 = vsyncpa [#allocation3], 1
    %77 = vsyncpa [#allocation4], 1

</llo_original>
